<compile_context>
chip_gen: v7x
topology: tpu7x:2x2x1
jax: 0.10.0
libtpu: 0.0.40
codegen_flags: <defaults>
</compile_context>

<pallas_src>
import math
import functools

import jax
import jax.numpy as jnp
from jax.experimental import pallas as pl
from jax.experimental.pallas import tpu as pltpu


def make_pos_embedding(emb_size: int, maxlen: int = 750) -> jnp.ndarray:
    """Replicates the buffer built in PositionalEncoding.__init__ -> (maxlen, 1, emb_size)."""
    den = jnp.exp(-jnp.arange(0, emb_size, 2, dtype=jnp.float32)
                  * (math.log(10000.0) / emb_size))
    pos = jnp.arange(0, maxlen, dtype=jnp.float32).reshape(maxlen, 1)
    angles = pos * den                                        # (maxlen, ceil(E/2))
    pe = jnp.zeros((maxlen, emb_size), dtype=jnp.float32)
    pe = pe.at[:, 0::2].set(jnp.sin(angles))
    pe = pe.at[:, 1::2].set(jnp.cos(angles[:, : emb_size // 2]))   # odd-E safe
    return pe[:, None, :]                                     # (maxlen, 1, emb_size)


def _add_pe_kernel(x_ref, pe_ref, o_ref, *, batch_per_block: int, emb: int):
    """x_ref/o_ref: (ts, tb*E) lane-dense blocks; pe_ref: (ts, E) streamed PE tile.

    PE is added per batch chunk (static unrolled loop) -> no concat temp, no
    extra VMEM store/load pass; each chunk is one add + one store.
    """
    pe = pe_ref[...]                                          # (ts, E)
    for b in range(batch_per_block):
        lo, hi = b * emb, (b + 1) * emb                       # static, E-aligned chunks
        o_ref[:, lo:hi] = (x_ref[:, lo:hi] + pe).astype(o_ref.dtype)


def _vmem_plan():
    """Generation-aware (target_block_bytes, vmem_budget_bytes)."""
    cap = 128 << 20
    try:
        info = pltpu.get_tpu_info()
        cap = int(getattr(info, "vmem_capacity_bytes", cap) or cap)
    except Exception:
        pass
    if cap <= (64 << 20):               # v7x: 64 MiB per TensorCore
        return 8 << 20, 40 << 20
    return 16 << 20, 96 << 20           # v5e / v6e: 128 MiB physical VMEM


def _choose_seq_tile(seq_len: int, lane_width: int, itemsize: int,
                     target_block_bytes: int) -> int:
    """Multiple-of-8 seq tile from the per-block byte budget, with >=4 grid
    steps (even when possible) so both v7x TensorCores pipeline their DMA."""
    if seq_len <= 8:
        return seq_len                                        # single full-extent block
    ts = max(8, (target_block_bytes // max(1, lane_width * itemsize)) // 8 * 8)
    min_steps = 4 if seq_len >= 32 else 2
    cap = max(8, (-(-seq_len // min_steps)) // 8 * 8)         # floor8(ceil(S/min_steps))
    ts = min(ts, cap)
    steps = -(-seq_len // ts)
    if steps > 1 and steps % 2 == 1 and ts > 8:               # prefer even step counts
        for cand in (ts - 8, ts + 8):
            cand_steps = -(-seq_len // cand)
            if cand >= 8 and cand_steps % 2 == 0 and cand_steps >= min(min_steps, steps):
                ts = cand
                break
    return ts


def positional_encoding_forward(token_embedding: jnp.ndarray,
                                pos_embedding: jnp.ndarray,
                                *, inplace: bool = False,
                                training: bool = False) -> jnp.ndarray:
    """token_embedding: (S, B, E); pos_embedding: (maxlen, 1, E) -> (S, B, E)."""
    if training:
        # TODO(synk): training-mode dropout (pltpu.prng_seed + prng_random_bits)
        # cannot bit-match torch RNG; only eval-mode forward is implemented.
        raise NotImplementedError("PositionalEncoding Pallas kernel is eval-mode only.")

    S, B, E = token_embedding.shape
    dtype = token_embedding.dtype
    itemsize = jnp.dtype(dtype).itemsize

    target_block_bytes, vmem_budget = _vmem_plan()

    def need_bytes(ts, tb):
        # 2x double-buffered input + 2x double-buffered output + 2x streamed PE.
        return 4 * ts * tb * E * itemsize + 2 * ts * E * itemsize

    # Batch (lane) tiling only if even a minimum 8-row full-batch block overflows
    # the budget; chunks stay E-aligned and are rounded to 128-lane multiples.
    tb = B
    min_rows = min(S, 8)
    if need_bytes(min_rows, B) > vmem_budget:
        row_bytes = 4 * min_rows * E * itemsize
        tb = max(1, min(B, int((vmem_budget - 2 * min_rows * E * itemsize)
                               // max(1, row_bytes))))
        lane_step = 128 // math.gcd(E, 128)                   # tb granularity keeping tb*E % 128 == 0
        tb = max(lane_step, (tb // lane_step) * lane_step)
        if tb >= B or (tb * E) % 128 != 0:
            tb = B                                            # best effort: full-batch blocks
    lane_width = tb * E

    ts = _choose_seq_tile(S, lane_width, itemsize, target_block_bytes)
    while ts > 8 and need_bytes(ts, tb) > vmem_budget:        # shrink instead of clamping limit
        ts = max(8, ((ts // 2) // 8) * 8)

    num_s = pl.cdiv(S, ts)
    num_b = pl.cdiv(B, tb)
    vmem_limit = int(max(need_bytes(ts, tb) + (4 << 20), 16 << 20))

    # Lane-dense 2-D views (layout plumbing only, no compute hoisting).
    x2d = token_embedding.reshape(S, B * E)
    pe2d = pos_embedding[:S, 0, :].astype(dtype)              # (S, E), streamed per step

    kernel = functools.partial(_add_pe_kernel, batch_per_block=tb, emb=E)
    out2d = pl.pallas_call(
        kernel,
        out_shape=jax.ShapeDtypeStruct((S, B * E), dtype),
        grid=(num_s, num_b),
        in_specs=[
            pl.BlockSpec((ts, lane_width), lambda i, j: (i, j)),   # streamed activation tiles
            pl.BlockSpec((ts, E), lambda i, j: (i, 0)),            # streamed PE tiles (no padding)
        ],
        out_specs=pl.BlockSpec((ts, lane_width), lambda i, j: (i, j)),
        input_output_aliases=({0: 0} if inplace else {}),
        compiler_params=pltpu.CompilerParams(
            dimension_semantics=("parallel", "parallel"),
            vmem_limit_bytes=vmem_limit,
        ),
    )(x2d, pe2d)

    # Dropout (p=0.1) in eval mode is identity.
    return out2d.reshape(S, B, E)


if __name__ == "__main__":
    maxlen = 750
    key = jax.random.PRNGKey(0)

    # Case 1: small module-consistent shapes (seq=8, batch=2, emb=32), f32.
    S, B, E = 8, 2, 32
    x = jax.random.normal(key, (S, B, E), dtype=jnp.float32)
    pe = make_pos_embedding(E, maxlen)
    y = jax.block_until_ready(positional_encoding_forward(x, pe))
    y_ref = x + pe[:S]
    assert y.shape == (S, B, E)
    assert jnp.allclose(y, y_ref, atol=1e-6), "f32 mismatch vs reference"

    # Case 2: ragged sequence (S=40 not divisible by the tile) -> multi-step
    # streamed-PE path with a masked last tile.
    S2, B2, E2 = 40, 3, 32
    k2, k3 = jax.random.split(key)
    x2 = jax.random.normal(k2, (S2, B2, E2), dtype=jnp.float32)
    pe2 = make_pos_embedding(E2, maxlen)
    y2 = jax.block_until_ready(positional_encoding_forward(x2, pe2))
    assert jnp.allclose(y2, x2 + pe2[:S2], atol=1e-6), "ragged mismatch vs reference"

    # Case 3: bf16 activations stay bf16 end-to-end (PE cast in the wrapper).
    xb = x.astype(jnp.bfloat16)
    yb = jax.block_until_ready(positional_encoding_forward(xb, pe))
    yb_ref = xb + pe[:S].astype(jnp.bfloat16)
    assert yb.dtype == jnp.bfloat16
    assert jnp.allclose(yb.astype(jnp.float32), yb_ref.astype(jnp.float32),
                        atol=1e-2), "bf16 mismatch vs reference"

    # Case 4: lane-aligned embedding (E=128) with multiple even grid steps.
    S4, B4, E4 = 48, 2, 128
    x4 = jax.random.normal(k3, (S4, B4, E4), dtype=jnp.float32)
    pe4 = make_pos_embedding(E4, maxlen)
    y4 = jax.block_until_ready(positional_encoding_forward(x4, pe4))
    assert jnp.allclose(y4, x4 + pe4[:S4], atol=1e-5), "E=128 mismatch vs reference"

    # Case 5: in-place variant via input_output_aliases (pair with
    # jax.jit(..., donate_argnums=(0,)) in production so the alias is real).
    y_ip = jax.block_until_ready(positional_encoding_forward(x, pe, inplace=True))
    assert jnp.allclose(y_ip, y_ref, atol=1e-6), "inplace mismatch vs reference"

    print("KERNEL_OK")
</pallas_src>

<mosaic_0001>
module attributes {stable_mosaic.version = 11 : i64} {
  func.func @_add_pe_kernel(%arg0: i32, %arg1: i32, %arg2: memref<8x64xf32, #tpu.memory_space<vmem>>, %arg3: memref<8x32xf32, #tpu.memory_space<vmem>>, %arg4: memref<8x64xf32, #tpu.memory_space<vmem>>) attributes {dimension_semantics = [#tpu.dimension_semantics<parallel>, #tpu.dimension_semantics<parallel>], iteration_bounds = array<i64: 1, 1>, scalar_prefetch = 0 : i64, scratch_operands = 0 : i64, tpu.core_type = #tpu.core_type<tc>, window_params = [{transform_indices = @transform_0, window_bounds = array<i64: 8, 64>}, {transform_indices = @transform_1, window_bounds = array<i64: 8, 32>}, {transform_indices = @transform_2, window_bounds = array<i64: 8, 64>}]} {
    %c0 = arith.constant 0 : index
    %c0_0 = arith.constant 0 : index
    %0 = vector.load %arg3[%c0, %c0_0] : memref<8x32xf32, #tpu.memory_space<vmem>>, vector<8x32xf32>
    %c0_1 = arith.constant 0 : index
    %c0_2 = arith.constant 0 : index
    %1 = vector.load %arg2[%c0_1, %c0_2] : memref<8x64xf32, #tpu.memory_space<vmem>>, vector<8x32xf32>
    %2 = arith.addf %1, %0 : vector<8x32xf32>
    %c0_3 = arith.constant 0 : index
    %c0_4 = arith.constant 0 : index
    %3 = vector.load %arg4[%c0_3, %c0_4] : memref<8x64xf32, #tpu.memory_space<vmem>>, vector<8x32xf32>
    tpu.vector_store %arg4[%c0_3, %c0_4], %2 {strides = array<i32>} : memref<8x64xf32, #tpu.memory_space<vmem>>, vector<8x32xf32>,
    %c0_5 = arith.constant 0 : index
    %c32 = arith.constant 32 : index
    %4 = vector.load %arg2[%c0_5, %c32] : memref<8x64xf32, #tpu.memory_space<vmem>>, vector<8x32xf32>
    %5 = arith.addf %4, %0 : vector<8x32xf32>
    %c0_6 = arith.constant 0 : index
    %c32_7 = arith.constant 32 : index
    %6 = vector.load %arg4[%c0_6, %c32_7] : memref<8x64xf32, #tpu.memory_space<vmem>>, vector<8x32xf32>
    tpu.vector_store %arg4[%c0_6, %c32_7], %5 {strides = array<i32>} : memref<8x64xf32, #tpu.memory_space<vmem>>, vector<8x32xf32>,
    return
  }
  func.func @transform_0(%arg0: i32, %arg1: i32) -> (i32, i32) {
    %c0_i32 = arith.constant 0 : i32
    return %arg0, %arg1 : i32, i32
  }
  func.func @transform_1(%arg0: i32, %arg1: i32) -> (i32, i32) {
    %c0_i32 = arith.constant 0 : i32
    %c0_i32_0 = arith.constant 0 : i32
    return %arg0, %c0_i32 : i32, i32
  }
  func.func @transform_2(%arg0: i32, %arg1: i32) -> (i32, i32) {
    %c0_i32 = arith.constant 0 : i32
    return %arg0, %arg1 : i32, i32
  }
}

</mosaic_0001>

<llo_original>
// kernel: tpu_custom_call.1
$region0: #{tpu_custom_call.1}
  #allocation0 [shape = 'u32[]', space=smem, size = 0x4, offset = 0x4, fixed_abs, tag = 'smem constant byte address 0x4 - core index']
  #allocation1 [shape = 'u32[144,128]{1,0:T(1,128)}', space=vmem, size = 0x12000, scoped, tag = 'internal scratch']
  %s0 = inlined_call_operand.hbm [shape: f32[8,64], index: 0, kind: input, shape index: {}]
  %s1 = inlined_call_operand.hbm [shape: f32[8,32], index: 1, kind: input, shape index: {}]
  %s2 = inlined_call_operand.hbm [shape: f32[8,64], index: 2, kind: output, shape index: {}]
  %s3 = sld [smem:[#allocation0]]
  $region26: #{tpu_custom_call.1} parent=0
    _
  %s5 = ssub.s32 1, %s3
  %s6 = scalar_select 0, %s5, %s3
  $region1: #{tpu_custom_call.1} parent=0
    #allocation2 [shape = 'u8[4096]{0}', space=vmem, size = 0x1000, scoped, tag = 'input window, operand 0, single buffered']
    #allocation3 [shape = 's32[1]{0}', space=sflag, size = 0x4, scoped, tag = 'scoped memory for tpu_custom_call.1']
    #allocation4 [shape = 's32[1]{0}', space=sflag, size = 0x4, scoped, tag = 'scoped memory for tpu_custom_call.1']
    #allocation5 [shape = 'u8[4096]{0}', space=vmem, size = 0x1000, scoped, tag = 'input window, operand 1, single buffered']
    #allocation6 [shape = 's32[1]{0}', space=sflag, size = 0x4, scoped, tag = 'scoped memory for tpu_custom_call.1']
    #allocation7 [shape = 'u8[4096]{0}', space=vmem, size = 0x1000, scoped, tag = 'output window, operand 0, single buffered']
    %7 = vsyncpa [#allocation3], 0
    %8 = vsyncpa [#allocation6], 0
    %9 = vsyncpa [#allocation4], 0
    // Predicated region
    $region2: #{tpu_custom_call.1} parent=1 // pred_check
      _
    $region3: #{tpu_custom_call.1} parent=1 // pred_check_branch
      %11 = sbr.rel (0) target = $region5
    $region4: #{tpu_custom_call.1} parent=1 // pred_region
      %s13 = ssub.s32 128, 128
      %14 = vsyncadd [#allocation3], %s13
      %s16 = sshll.u32 [#allocation2], 4
      %s17 = int_to_ptr.vmem [resolvable:$true] %s16
      %19 = dma.hbm_to_vmem [thread:$0]  %s0, 128, %s17, [#allocation3]
    $region5: #{tpu_custom_call.1} parent=1 // pred_fallthru
      _
    // Predicated region
    $region6: #{tpu_custom_call.1} parent=1 // pred_check
      _
    $region7: #{tpu_custom_call.1} parent=1 // pred_check_branch
      %21 = sbr.rel (0) target = $region9
    $region8: #{tpu_custom_call.1} parent=1 // pred_region
      %s23 = ssub.s32 128, 128
      %24 = vsyncadd [#allocation6], %s23
      %s26 = sshll.u32 [#allocation5], 4
      %s27 = int_to_ptr.vmem [resolvable:$true] %s26
      %29 = dma.hbm_to_vmem [thread:$0]  %s1, 128, %s27, [#allocation6]
    $region9: #{tpu_custom_call.1} parent=1 // pred_fallthru
      _
    // Predicated region
    $region10: #{tpu_custom_call.1} parent=1 // pred_check
      _
    $region11: #{tpu_custom_call.1} parent=1 // pred_check_branch
      %31 = sbr.rel (0) target = $region13
    $region12: #{tpu_custom_call.1} parent=1 // pred_region
      %32 = dma.done [#allocation3], 128
    $region13: #{tpu_custom_call.1} parent=1 // pred_fallthru
      _
    // Predicated region
    $region14: #{tpu_custom_call.1} parent=1 // pred_check
      _
    $region15: #{tpu_custom_call.1} parent=1 // pred_check_branch
      %34 = sbr.rel (0) target = $region17
    $region16: #{tpu_custom_call.1} parent=1 // pred_region
      %35 = dma.done [#allocation6], 128
    $region17: #{tpu_custom_call.1} parent=1 // pred_fallthru
      _
    %v36 = vld [vmem:[#allocation5] sm:$0xff]
    %v37 = vld [vmem:[#allocation2] sm:$0xff]
    %v38 = vadd.f32 %v37, %v36
    %vm39 = vcmask 261120
    %40 = vst.msk [vmem:[#allocation7] sm:$0xff] %vm39, %v38
    %v41 = vld [vmem:[#allocation2] sm:$0xff]
    %43 = vrot.lane.b32.xlu0 %v36, 32
    %v44 = vpop.permute.xlu0 %43
    %v46 = vadd.f32 %v41, %v44
    %vm47 = vcmask 523520
    %48 = vst.msk [vmem:[#allocation7] sm:$0xff] %vm47, %v46
    // Predicated region
    $region18: #{tpu_custom_call.1} parent=1 // pred_check
      _
    $region19: #{tpu_custom_call.1} parent=1 // pred_check_branch
      %50 = sbr.rel (0) target = $region21
    $region20: #{tpu_custom_call.1} parent=1 // pred_region
      %s52 = ssub.s32 128, 128
      %53 = vsyncadd [#allocation4], %s52
      %s55 = sshll.u32 [#allocation7], 4
      %s56 = int_to_ptr.vmem [resolvable:$true] %s55
      %58 = dma.vmem_to_hbm [thread:$0]  %s56, 128, %s2, [#allocation4]
    $region21: #{tpu_custom_call.1} parent=1 // pred_fallthru
      _
    // Predicated region
    $region22: #{tpu_custom_call.1} parent=1 // pred_check
      _
    $region23: #{tpu_custom_call.1} parent=1 // pred_check_branch
      %60 = sbr.rel (0) target = $region25
    $region24: #{tpu_custom_call.1} parent=1 // pred_region
      %61 = dma.done [#allocation4], 128
    $region25: #{tpu_custom_call.1} parent=1 // pred_fallthru
      _
    %62 = vsyncpa [#allocation3], 1
    %63 = vsyncpa [#allocation6], 1
    %64 = vsyncpa [#allocation4], 1

</llo_original>
